<compile_context>
chip_gen: v7x
topology: tpu7x:2x2x1
jax: 0.10.0
libtpu: 0.0.40
codegen_flags: <defaults>
</compile_context>

<pallas_src>
import jax
import jax.numpy as jnp
from jax.experimental import pallas as pl
from jax.experimental.pallas import tpu as pltpu


def _patch_embed_kernel(x_ref, w_ref, b_ref, o_ref):
    # x_ref: (tm, gb*P), w_ref: (gb*P, gb*E) block-diagonal, b_ref: (1, gb*E) f32
    acc = jnp.dot(x_ref[...], w_ref[...], preferred_element_type=jnp.float32)
    o_ref[...] = (acc + b_ref[...]).astype(o_ref.dtype)


def _round_up(x, m):
    return ((x + m - 1) // m) * m


def _pick_gb(G, P, E):
    """Smallest gb dividing G with lane-dense (128-multiple) x and out blocks."""
    for gb in range(1, G + 1):
        if G % gb == 0 and (gb * P) % 128 == 0 and (gb * E) % 128 == 0:
            return gb
    # Fallback: one block covering the full G axis (full-dim blocks are always legal).
    return G


def patch_embed_audio(x, weight, bias, *, patch_size, compute_dtype=None,
                      out_dtype=None, vmem_budget_bytes=24 << 20):
    """x: (B, N, L); weight: (E, 1, 1, P) conv weight; bias: (E,).

    compute_dtype: dtype for x / weight HBM traffic and the MXU (e.g. bf16).
    out_dtype:     dtype of the returned embedding (default: x.dtype).
    """
    B, N, L = x.shape
    P = patch_size
    assert L % P == 0, "audio_len must be a multiple of patch_size"
    G = L // P
    E = weight.shape[0]

    compute_dtype = jnp.dtype(compute_dtype if compute_dtype is not None else x.dtype)
    out_dtype = jnp.dtype(out_dtype if out_dtype is not None else x.dtype)

    gb = _pick_gb(G, P, E)
    g_tiles = G // gb
    KX = gb * P          # lane width of the x block (contraction dim)
    KO = gb * E          # lane width of the output block

    # Shared block-diagonal weight tile (gb copies of W on the diagonal) and tiled bias.
    w2d = weight.reshape(E, P).T.astype(compute_dtype)                    # (P, E)
    eye = jnp.eye(gb, dtype=compute_dtype)
    w_bd = jnp.einsum("ij,pe->ipje", eye, w2d).reshape(KX, KO)            # (gb*P, gb*E)
    b_bd = jnp.tile(bias.astype(jnp.float32), gb).reshape(1, KO)          # (1, gb*E)

    x2d = x.reshape(B * N, L).astype(compute_dtype)
    mrow = B * N

    # --- row-tile selection: fill (most of) double-buffered VMEM ------------
    in_b = compute_dtype.itemsize
    out_b = out_dtype.itemsize
    fixed = 2 * KX * KO * in_b + 2 * KO * 4          # weight + bias buffers
    per_row = 2 * (KX * in_b + KO * out_b)           # double-buffered x + out blocks
    tm = max(8, int((vmem_budget_bytes - fixed) // per_row))
    tm = min(tm, mrow)
    # Keep >=2 grid steps when possible so v7x megacore can shard the work.
    if g_tiles * (-(-mrow // max(tm, 1))) < 2 and mrow >= 16:
        tm = -(-mrow // 2)
    if tm >= mrow:
        tm = mrow
        mrow_p = mrow                                 # full-dim block: always legal
    else:
        tm = max(8, (tm // 8) * 8)                    # sublane-aligned tile
        mrow_p = _round_up(mrow, tm)
    if mrow_p != mrow:
        x2d = jnp.pad(x2d, ((0, mrow_p - mrow), (0, 0)))
    row_tiles = mrow_p // tm

    cost = pl.CostEstimate(
        flops=2 * row_tiles * g_tiles * tm * KX * KO,
        transcendentals=0,
        bytes_accessed=(mrow_p * L * in_b) + (KX * KO * in_b) + (KO * 4)
                       + (mrow_p * G * E * out_b),
    )

    out2d = pl.pallas_call(
        _patch_embed_kernel,
        out_shape=jax.ShapeDtypeStruct((mrow_p, G * E), out_dtype),
        grid_spec=pltpu.PrefetchScalarGridSpec(
            num_scalar_prefetch=0,
            grid=(row_tiles, g_tiles),
            in_specs=[
                pl.BlockSpec((tm, KX), lambda i, j: (i, j)),   # x columns for g-block j
                pl.BlockSpec((KX, KO), lambda i, j: (0, 0)),   # shared block-diag weight
                pl.BlockSpec((1, KO), lambda i, j: (0, 0)),    # tiled bias (f32)
            ],
            out_specs=pl.BlockSpec((tm, KO), lambda i, j: (i, j)),
        ),
        compiler_params=pltpu.CompilerParams(
            dimension_semantics=("parallel", "parallel"),
            vmem_limit_bytes=48 * 1024 * 1024,
        ),
        cost_estimate=cost,
    )(x2d, w_bd, b_bd)

    out2d = out2d[:mrow]
    # (B*N, G*E) -> (B, N*G, E); memory order already matches flatten(2).transpose(1,2).
    return out2d.reshape(B, N * G, E)


if __name__ == "__main__":
    # Small, module-consistent shapes.
    B = 2
    num_mics = 4
    audio_len = 128
    patch_size = 16
    embed_dim = 32
    grid_size = audio_len // patch_size          # 8
    num_patches = grid_size * num_mics           # 32

    key = jax.random.PRNGKey(0)
    kx, kw, kb = jax.random.split(key, 3)

    x = jax.random.normal(kx, (B, num_mics, audio_len), dtype=jnp.float32)
    # Conv2d(1, embed_dim, kernel_size=(1, patch_size)) weight/bias shapes.
    conv_w = jax.random.normal(kw, (embed_dim, 1, 1, patch_size), dtype=jnp.float32) * 0.02
    conv_b = jax.random.normal(kb, (embed_dim,), dtype=jnp.float32) * 0.02

    # Reference in plain JAX (same math as the PyTorch conv + flatten + transpose).
    x_patches = x.reshape(B, num_mics, grid_size, patch_size)
    ref = (
        jnp.einsum("bngp,ep->bnge", x_patches, conv_w.reshape(embed_dim, patch_size))
        + conv_b
    ).reshape(B, num_patches, embed_dim)

    # f32 path (tight tolerance).
    out = patch_embed_audio(x, conv_w, conv_b, patch_size=patch_size)
    out = jax.block_until_ready(out)
    assert out.shape == (B, num_patches, embed_dim), out.shape
    assert jnp.allclose(out, ref, atol=1e-4, rtol=1e-4), "f32 mismatch vs reference"

    # bf16-I/O path (halved HBM traffic; f32 accumulate) — looser tolerance.
    out_bf16 = patch_embed_audio(
        x, conv_w, conv_b, patch_size=patch_size,
        compute_dtype=jnp.bfloat16, out_dtype=jnp.float32,
    )
    out_bf16 = jax.block_until_ready(out_bf16)
    assert jnp.allclose(out_bf16, ref, atol=3e-2, rtol=3e-2), "bf16 mismatch vs reference"

    print("KERNEL_OK")
</pallas_src>

<mosaic_0001>
module attributes {stable_mosaic.version = 11 : i64} {
  func.func @_patch_embed_kernel(%arg0: i32, %arg1: i32, %arg2: memref<8x128xf32, #tpu.memory_space<vmem>>, %arg3: memref<128x256xf32, #tpu.memory_space<vmem>>, %arg4: memref<1x256xf32, #tpu.memory_space<vmem>>, %arg5: memref<8x256xf32, #tpu.memory_space<vmem>>) attributes {dimension_semantics = [#tpu.dimension_semantics<parallel>, #tpu.dimension_semantics<parallel>], iteration_bounds = array<i64: 1, 1>, scalar_prefetch = 0 : i64, scratch_operands = 0 : i64, tpu.core_type = #tpu.core_type<tc>, window_params = [{transform_indices = @transform_0, window_bounds = array<i64: 8, 128>}, {pipeline_mode = #tpu.pipeline_mode<synchronous>, transform_indices = @transform_1, window_bounds = array<i64: 128, 256>}, {pipeline_mode = #tpu.pipeline_mode<synchronous>, transform_indices = @transform_2, window_bounds = array<i64: 1, 256>}, {transform_indices = @transform_3, window_bounds = array<i64: 8, 256>}]} {
    %c0 = arith.constant 0 : index
    %c0_0 = arith.constant 0 : index
    %0 = vector.load %arg2[%c0, %c0_0] : memref<8x128xf32, #tpu.memory_space<vmem>>, vector<8x128xf32>
    %c0_1 = arith.constant 0 : index
    %c0_2 = arith.constant 0 : index
    %1 = vector.load %arg3[%c0_1, %c0_2] : memref<128x256xf32, #tpu.memory_space<vmem>>, vector<128x256xf32>
    %cst = arith.constant dense<0.000000e+00> : vector<8x256xf32>
    %2 = tpu.matmul %0, %1, %cst {dimension_numbers = #tpu.dot_dimension_numbers<[1], [0], [0], [1], [0, 0, 1, 1], [], []>} : vector<8x128xf32>, vector<128x256xf32>, vector<8x256xf32> -> vector<8x256xf32>
    %c0_3 = arith.constant 0 : index
    %c0_4 = arith.constant 0 : index
    %3 = vector.load %arg4[%c0_3, %c0_4] : memref<1x256xf32, #tpu.memory_space<vmem>>, vector<1x256xf32>
    %4 = vector.broadcast %3 : vector<1x256xf32> to vector<8x256xf32>
    %5 = arith.addf %2, %4 : vector<8x256xf32>
    %c0_5 = arith.constant 0 : index
    %c0_6 = arith.constant 0 : index
    %6 = vector.load %arg5[%c0_5, %c0_6] : memref<8x256xf32, #tpu.memory_space<vmem>>, vector<8x256xf32>
    tpu.vector_store %arg5[%c0_5, %c0_6], %5 {strides = array<i32>} : memref<8x256xf32, #tpu.memory_space<vmem>>, vector<8x256xf32>,
    return
  }
  func.func @transform_0(%arg0: i32, %arg1: i32) -> (i32, i32) {
    %c0_i32 = arith.constant 0 : i32
    return %arg0, %arg1 : i32, i32
  }
  func.func @transform_1(%arg0: i32, %arg1: i32) -> (i32, i32) {
    %c0_i32 = arith.constant 0 : i32
    %c0_i32_0 = arith.constant 0 : i32
    %c0_i32_1 = arith.constant 0 : i32
    return %c0_i32, %c0_i32_0 : i32, i32
  }
  func.func @transform_2(%arg0: i32, %arg1: i32) -> (i32, i32) {
    %c0_i32 = arith.constant 0 : i32
    %c0_i32_0 = arith.constant 0 : i32
    %c0_i32_1 = arith.constant 0 : i32
    return %c0_i32, %c0_i32_0 : i32, i32
  }
  func.func @transform_3(%arg0: i32, %arg1: i32) -> (i32, i32) {
    %c0_i32 = arith.constant 0 : i32
    return %arg0, %arg1 : i32, i32
  }
}

</mosaic_0001>

<llo_original>
// kernel: tpu_custom_call.1
$region0: #{tpu_custom_call.1}
  #allocation0 [shape = 'u32[]', space=smem, size = 0x4, offset = 0x4, fixed_abs, tag = 'smem constant byte address 0x4 - core index']
  #allocation1 [shape = 'u32[144,128]{1,0:T(1,128)}', space=vmem, size = 0x12000, scoped, tag = 'internal scratch']
  %s0 = inlined_call_operand.hbm [shape: f32[8,128], index: 0, kind: input, shape index: {}]
  %s1 = inlined_call_operand.hbm [shape: f32[128,256], index: 1, kind: input, shape index: {}]
  %s2 = inlined_call_operand.vmem [shape: f32[1,256], index: 2, kind: input, shape index: {}]
  %s3 = inlined_call_operand.hbm [shape: f32[8,256], index: 3, kind: output, shape index: {}]
  %s4 = sld [smem:[#allocation0]]
  $region30: #{tpu_custom_call.1} parent=0
    _
  %s6 = ssub.s32 1, %s4
  %s7 = scalar_select 0, %s6, %s4
  $region1: #{tpu_custom_call.1} parent=0
    #allocation2 [shape = 'u8[4096]{0}', space=vmem, size = 0x1000, scoped, tag = 'input window, operand 0, single buffered']
    #allocation3 [shape = 's32[1]{0}', space=sflag, size = 0x4, scoped, tag = 'scoped memory for tpu_custom_call.1']
    #allocation4 [shape = 's32[1]{0}', space=sflag, size = 0x4, scoped, tag = 'scoped memory for tpu_custom_call.1']
    #allocation5 [shape = 'u8[131072]{0}', space=vmem, size = 0x20000, scoped, tag = 'input window, operand 1, single buffered']
    #allocation6 [shape = 's32[1]{0}', space=sflag, size = 0x4, scoped, tag = 'scoped memory for tpu_custom_call.1']
    #allocation7 [shape = 'u8[8192]{0}', space=vmem, size = 0x2000, scoped, tag = 'output window, operand 0, single buffered']
    %8 = vsyncpa [#allocation3], 0
    %9 = vsyncpa [#allocation6], 0
    %10 = vsyncpa [#allocation4], 0
    // Predicated region
    $region2: #{tpu_custom_call.1} parent=1 // pred_check
      _
    $region3: #{tpu_custom_call.1} parent=1 // pred_check_branch
      %12 = sbr.rel (0) target = $region5
    $region4: #{tpu_custom_call.1} parent=1 // pred_region
      %s14 = ssub.s32 128, 128
      %15 = vsyncadd [#allocation3], %s14
      %s17 = sshll.u32 [#allocation2], 4
      %s18 = int_to_ptr.vmem [resolvable:$true] %s17
      %20 = dma.hbm_to_vmem [thread:$0]  %s0, 128, %s18, [#allocation3]
    $region5: #{tpu_custom_call.1} parent=1 // pred_fallthru
      _
    // Predicated region
    $region6: #{tpu_custom_call.1} parent=1 // pred_check
      _
    $region7: #{tpu_custom_call.1} parent=1 // pred_check_branch
      %22 = sbr.rel (0) target = $region9
    $region8: #{tpu_custom_call.1} parent=1 // pred_region
      %s24 = ssub.s32 4096, 4096
      %25 = vsyncadd [#allocation6], %s24
      %s26 = sshll.u32 [#allocation5], 4
      %s27 = int_to_ptr.vmem [resolvable:$true] %s26
      %32 = dma.hbm_to_vmem [thread:$0]  %s1, 4096, %s27, [#allocation6], 256, 256, 16
    $region9: #{tpu_custom_call.1} parent=1 // pred_fallthru
      _
    // Predicated region
    $region10: #{tpu_custom_call.1} parent=1 // pred_check
      _
    $region11: #{tpu_custom_call.1} parent=1 // pred_check_branch
      %34 = sbr.rel (0) target = $region13
    $region12: #{tpu_custom_call.1} parent=1 // pred_region
      _
    $region13: #{tpu_custom_call.1} parent=1 // pred_fallthru
      _
    // Predicated region
    $region14: #{tpu_custom_call.1} parent=1 // pred_check
      _
    $region15: #{tpu_custom_call.1} parent=1 // pred_check_branch
      %36 = sbr.rel (0) target = $region17
    $region16: #{tpu_custom_call.1} parent=1 // pred_region
      %37 = dma.done [#allocation3], 128
    $region17: #{tpu_custom_call.1} parent=1 // pred_fallthru
      _
    // Predicated region
    $region18: #{tpu_custom_call.1} parent=1 // pred_check
      _
    $region19: #{tpu_custom_call.1} parent=1 // pred_check_branch
      %39 = sbr.rel (0) target = $region21
    $region20: #{tpu_custom_call.1} parent=1 // pred_region
      %40 = dma.done [#allocation6], 4096
    $region21: #{tpu_custom_call.1} parent=1 // pred_fallthru
      _
    %v41 = vld [vmem:[#allocation2] sm:$0xff]
    %v42 = vld [vmem:[#allocation5] sm:$0xff]
    %v43 = vld [vmem:[#allocation5 + $0x8] sm:$0xff]
    %v44 = vld [vmem:[#allocation5 + $0x10] sm:$0xff]
    %v45 = vld [vmem:[#allocation5 + $0x18] sm:$0xff]
    %v46 = vld [vmem:[#allocation5 + $0x20] sm:$0xff]
    %v47 = vld [vmem:[#allocation5 + $0x28] sm:$0xff]
    %v48 = vld [vmem:[#allocation5 + $0x30] sm:$0xff]
    %v49 = vld [vmem:[#allocation5 + $0x38] sm:$0xff]
    %v50 = vld [vmem:[#allocation5 + $0x40] sm:$0xff]
    %v51 = vld [vmem:[#allocation5 + $0x48] sm:$0xff]
    %v52 = vld [vmem:[#allocation5 + $0x50] sm:$0xff]
    %v53 = vld [vmem:[#allocation5 + $0x58] sm:$0xff]
    %v54 = vld [vmem:[#allocation5 + $0x60] sm:$0xff]
    %v55 = vld [vmem:[#allocation5 + $0x68] sm:$0xff]
    %v56 = vld [vmem:[#allocation5 + $0x70] sm:$0xff]
    %v57 = vld [vmem:[#allocation5 + $0x78] sm:$0xff]
    %v58 = vld [vmem:[#allocation5 + $0x80] sm:$0xff]
    %v59 = vld [vmem:[#allocation5 + $0x88] sm:$0xff]
    %v60 = vld [vmem:[#allocation5 + $0x90] sm:$0xff]
    %v61 = vld [vmem:[#allocation5 + $0x98] sm:$0xff]
    %v62 = vld [vmem:[#allocation5 + $0xa0] sm:$0xff]
    %v63 = vld [vmem:[#allocation5 + $0xa8] sm:$0xff]
    %v64 = vld [vmem:[#allocation5 + $0xb0] sm:$0xff]
    %v65 = vld [vmem:[#allocation5 + $0xb8] sm:$0xff]
    %v66 = vld [vmem:[#allocation5 + $0xc0] sm:$0xff]
    %v67 = vld [vmem:[#allocation5 + $0xc8] sm:$0xff]
    %v68 = vld [vmem:[#allocation5 + $0xd0] sm:$0xff]
    %v69 = vld [vmem:[#allocation5 + $0xd8] sm:$0xff]
    %v70 = vld [vmem:[#allocation5 + $0xe0] sm:$0xff]
    %v71 = vld [vmem:[#allocation5 + $0xe8] sm:$0xff]
    %v72 = vld [vmem:[#allocation5 + $0xf0] sm:$0xff]
    %v73 = vld [vmem:[#allocation5 + $0xf8] sm:$0xff]
    %v74 = vld [vmem:[%s2] sm:$0x3]
    %v76 = vlaneseq
    %v77 = vshrl.u32 %v76, 7
    %v78 = vsub.s32 0, %v77
    %v79 = vrot.slane %v74, %v78
    %v80 = vlaneseq
    %v81 = vshrl.u32 %v80, 7
    %v82 = vsub.s32 1, %v81
    %v83 = vrot.slane %v74, %v82
    %86 = vmatprep.subr.mxu0 %v43
    %87 = vmatpush1.msra.mxu0 %v42
    %88 = vmatprep.subr.mxu0 %v45
    %89 = vmatpush1.msra.mxu0 %v44
    %90 = vmatprep.subr.mxu0 %v47
    %91 = vmatpush1.msra.mxu0 %v46
    %92 = vmatprep.subr.mxu0 %v49
    %93 = vmatpush1.msra.mxu0 %v48
    %94 = vmatprep.subr.mxu0 %v51
    %95 = vmatpush1.msra.mxu0 %v50
    %96 = vmatprep.subr.mxu0 %v53
    %97 = vmatpush1.msra.mxu0 %v52
    %98 = vmatprep.subr.mxu0 %v55
    %99 = vmatpush1.msra.mxu0 %v54
    %100 = vmatprep.subr.mxu0 %v57
    %101 = vmatpush1.msra.mxu0 %v56
    %102 = vmatprep.subr.mxu0 %v59
    %103 = vmatpush1.msra.mxu0 %v58
    %104 = vmatprep.subr.mxu0 %v61
    %105 = vmatpush1.msra.mxu0 %v60
    %106 = vmatprep.subr.mxu0 %v63
    %107 = vmatpush1.msra.mxu0 %v62
    %108 = vmatprep.subr.mxu0 %v65
    %109 = vmatpush1.msra.mxu0 %v64
    %110 = vmatprep.subr.mxu0 %v67
    %111 = vmatpush1.msra.mxu0 %v66
    %112 = vmatprep.subr.mxu0 %v69
    %113 = vmatpush1.msra.mxu0 %v68
    %114 = vmatprep.subr.mxu0 %v71
    %115 = vmatpush1.msra.mxu0 %v70
    %116 = vmatprep.subr.mxu0 %v73
    %117 = vmatpush1.msra.mxu0 %v72
    %118 = vmatprep.subr.mxu0 0.0
    %119 = vmatpush1.msra.mxu0 0.0
    %120 = vmatprep.subr.mxu0 0.0
    %121 = vmatpush1.msra.mxu0 0.0
    %122 = vmatprep.subr.mxu0 0.0
    %123 = vmatpush1.msra.mxu0 0.0
    %124 = vmatprep.subr.mxu0 0.0
    %125 = vmatpush1.msra.mxu0 0.0
    %126 = vmatprep.subr.mxu0 0.0
    %127 = vmatpush1.msra.mxu0 0.0
    %128 = vmatprep.subr.mxu0 0.0
    %129 = vmatpush1.msra.mxu0 0.0
    %130 = vmatprep.subr.mxu0 0.0
    %131 = vmatpush1.msra.mxu0 0.0
    %132 = vmatprep.subr.mxu0 0.0
    %133 = vmatpush1.msra.mxu0 0.0
    %134 = vmatprep.subr.mxu0 0.0
    %135 = vmatpush1.msra.mxu0 0.0
    %136 = vmatprep.subr.mxu0 0.0
    %137 = vmatpush1.msra.mxu0 0.0
    %138 = vmatprep.subr.mxu0 0.0
    %139 = vmatpush1.msra.mxu0 0.0
    %140 = vmatprep.subr.mxu0 0.0
    %141 = vmatpush1.msra.mxu0 0.0
    %142 = vmatprep.subr.mxu0 0.0
    %143 = vmatpush1.msra.mxu0 0.0
    %144 = vmatprep.subr.mxu0 0.0
    %145 = vmatpush1.msra.mxu0 0.0
    %146 = vmatprep.subr.mxu0 0.0
    %147 = vmatpush1.msra.mxu0 0.0
    %148 = vmatprep.subr.mxu0 0.0
    %149 = vmatpush1.msra.mxu0 0.0
    %150 = vmatprep.mubr.f32.mxu0 0.0
    %151 = vmatmul.mubr.f32.gmra.mrb[0].mxu0 %v41
    %v152 = vpop.f32.mrb[0].mxu0
    %v153 = vadd.f32 %v79, %v152
    %v154 = vpop.f32.mrb[0].mxu0
    %v155 = vadd.f32 %v83, %v154
    %156 = vdwg.mxu0
    %157 = vst [vmem:[#allocation7] sm:$0xff] %v153
    %158 = vst [vmem:[#allocation7 + $0x8] sm:$0xff] %v155
    // Predicated region
    $region22: #{tpu_custom_call.1} parent=1 // pred_check
      _
    $region23: #{tpu_custom_call.1} parent=1 // pred_check_branch
      %160 = sbr.rel (0) target = $region25
    $region24: #{tpu_custom_call.1} parent=1 // pred_region
      %s162 = ssub.s32 256, 256
      %163 = vsyncadd [#allocation4], %s162
      %s165 = sshll.u32 [#allocation7], 4
      %s166 = int_to_ptr.vmem [resolvable:$true] %s165
      %168 = dma.vmem_to_hbm [thread:$0]  %s166, 256, %s3, [#allocation4]
    $region25: #{tpu_custom_call.1} parent=1 // pred_fallthru
      _
    // Predicated region
    $region26: #{tpu_custom_call.1} parent=1 // pred_check
      _
    $region27: #{tpu_custom_call.1} parent=1 // pred_check_branch
      %170 = sbr.rel (0) target = $region29
    $region28: #{tpu_custom_call.1} parent=1 // pred_region
      %171 = dma.done [#allocation4], 256
    $region29: #{tpu_custom_call.1} parent=1 // pred_fallthru
      _
    %172 = vsyncpa [#allocation3], 1
    %173 = vsyncpa [#allocation6], 1
    %174 = vsyncpa [#allocation4], 1

</llo_original>
